<compile_context>
chip_gen: v7x
topology: tpu7x:2x2x1
jax: 0.10.0
libtpu: 0.0.40
codegen_flags: <defaults>
</compile_context>

<pallas_src>
import functools

import jax
import jax.numpy as jnp
from jax import lax
from jax.experimental import pallas as pl
from jax.experimental.pallas import tpu as pltpu


def _coords_norm_kernel(scale_ref, x_ref, o_ref, *, eps, d):
    """x_ref / o_ref: (block_rows, 128*d) VMEM tiles.

    Lane l of a row belongs to point l // d, coordinate l % d.  Rows are
    independent (each row = 128 whole points), so partial last blocks are safe.
    """
    x = x_ref[...].astype(jnp.float32)
    lanes = x.shape[-1]                              # 128 * d (static)

    # Squared norm of each point, landing on the point's first lane (l % d == 0).
    x2 = x * x
    s = x2
    for k in range(1, d):
        # roll by (lanes - k): brings x2[l + k] to lane l.  The wrap-around only
        # pollutes lanes with l % d != 0, which are never read out of `s`.
        s = s + pltpu.roll(x2, lanes - k, axis=1)

    # 1 / max(||x||, eps) == min(rsqrt(||x||^2), 1/eps); fold in the scalar scale.
    inv = jnp.minimum(lax.rsqrt(s), 1.0 / eps) * scale_ref[0]   # valid at l % d == 0

    # Broadcast each point's factor from its first lane to its other d-1 lanes.
    lane = lax.broadcasted_iota(jnp.int32, (1, lanes), 1)
    phase = lane % d
    factor = inv
    for k in range(1, d):
        factor = jnp.where(phase == k, pltpu.roll(inv, k, axis=1), factor)

    o_ref[...] = (x * factor).astype(o_ref.dtype)


def coords_norm(coords, scale, *, eps=1e-6, block_rows=1024):
    """coords: (..., D) array; scale: (1,) array. Returns same shape/dtype as coords."""
    orig_shape = coords.shape
    orig_dtype = coords.dtype
    D = orig_shape[-1]
    M = 1
    for s in orig_shape[:-1]:
        M *= s

    lanes = 128 * D                          # one row = 128 whole points, lane-dense
    m_pad = ((M + 127) // 128) * 128
    flat = coords.reshape(-1)                # free bitcast (row-major contiguous)
    if m_pad != M:
        flat = jnp.pad(flat, (0, (m_pad - M) * D))   # contiguous tail pad only
    rows = m_pad // 128
    x = flat.reshape(rows, lanes)

    # Block rows: full extent when small, else a multiple of 8 (sublane rule);
    # the ragged last block (rows % br) is masked by Pallas.
    br = rows if rows <= block_rows else max(8, (block_rows // 8) * 8)
    grid = (pl.cdiv(rows, br),)

    out = pl.pallas_call(
        functools.partial(_coords_norm_kernel, eps=float(eps), d=D),
        out_shape=jax.ShapeDtypeStruct((rows, lanes), orig_dtype),
        grid_spec=pltpu.PrefetchScalarGridSpec(
            num_scalar_prefetch=0,
            grid=grid,
            in_specs=[
                pl.BlockSpec(memory_space=pltpu.MemorySpace.SMEM),   # scale (1,)
                pl.BlockSpec((br, lanes), lambda i: (i, 0)),         # coords tile
            ],
            out_specs=pl.BlockSpec((br, lanes), lambda i: (i, 0)),
        ),
        compiler_params=pltpu.CompilerParams(
            dimension_semantics=("parallel",)),        # megacore-shardable
    )(scale.astype(jnp.float32), x)

    out_flat = out.reshape(-1)
    if m_pad != M:
        out_flat = out_flat[: M * D]
    return out_flat.reshape(orig_shape)


def _reference(coords, scale, eps):
    norm = jnp.linalg.norm(coords, axis=-1, keepdims=True)
    return coords / jnp.maximum(norm, eps) * scale[0]


if __name__ == "__main__":
    eps = 1e-6
    scale = jnp.full((1,), 1.0, dtype=jnp.float32)        # scale_init = 1.0

    # Case 1: small shape consistent with CoordsNorm usage: (batch, nodes, 3).
    key = jax.random.PRNGKey(0)
    coords = jax.random.normal(key, (2, 16, 3), dtype=jnp.float32)
    out = jax.block_until_ready(coords_norm(coords, scale, eps=eps))
    ref = _reference(coords, scale, eps)
    assert out.shape == coords.shape and out.dtype == coords.dtype
    assert jnp.allclose(out, ref, atol=1e-5, rtol=1e-5)

    # Case 2: point count a multiple of 128 (zero-pad path skipped entirely).
    coords2 = jax.random.normal(jax.random.PRNGKey(1), (1, 256, 3), dtype=jnp.float32)
    out2 = jax.block_until_ready(coords_norm(coords2, scale, eps=eps))
    assert jnp.allclose(out2, _reference(coords2, scale, eps), atol=1e-5, rtol=1e-5)

    # Case 3: exercises padding + multi-block grid + masked partial last block
    # (M = 1200 -> 1280 padded points -> 10 rows, block_rows = 8 -> grid of 2).
    coords3 = jax.random.normal(jax.random.PRNGKey(2), (1, 1200, 3), dtype=jnp.float32)
    out3 = jax.block_until_ready(coords_norm(coords3, scale, eps=eps, block_rows=8))
    assert jnp.allclose(out3, _reference(coords3, scale, eps), atol=1e-5, rtol=1e-5)

    print("KERNEL_OK")
</pallas_src>

<mosaic_0001>
module attributes {stable_mosaic.version = 11 : i64} {
  func.func @_coords_norm_kernel(%arg0: i32, %arg1: memref<1xf32, #tpu.memory_space<smem>>, %arg2: memref<1x384xf32, #tpu.memory_space<vmem>>, %arg3: memref<1x384xf32, #tpu.memory_space<vmem>>) attributes {dimension_semantics = [#tpu.dimension_semantics<parallel>], iteration_bounds = array<i64: 1>, scalar_prefetch = 0 : i64, scratch_operands = 0 : i64, tpu.core_type = #tpu.core_type<tc>, window_params = [{transform_indices = @transform_0, window_bounds = array<i64: 1>}, {transform_indices = @transform_1, window_bounds = array<i64: 1, 384>}, {transform_indices = @transform_2, window_bounds = array<i64: 1, 384>}]} {
    %c0 = arith.constant 0 : index
    %c0_0 = arith.constant 0 : index
    %0 = vector.load %arg2[%c0, %c0_0] : memref<1x384xf32, #tpu.memory_space<vmem>>, vector<1x384xf32>
    %1 = arith.mulf %0, %0 : vector<1x384xf32>
    %c383_i32 = arith.constant 383 : i32
    %2 = tpu.dynamic_rotate %1 by %c383_i32 dim 1 : vector<1x384xf32>, i32 -> vector<1x384xf32>
    %3 = arith.addf %1, %2 : vector<1x384xf32>
    %c382_i32 = arith.constant 382 : i32
    %4 = tpu.dynamic_rotate %1 by %c382_i32 dim 1 : vector<1x384xf32>, i32 -> vector<1x384xf32>
    %5 = arith.addf %3, %4 : vector<1x384xf32>
    %6 = math.rsqrt %5 : vector<1x384xf32>
    %cst = arith.constant 1.000000e+06 : f32
    %7 = vector.broadcast %cst : f32 to vector<1x384xf32>
    %8 = arith.minimumf %6, %7 : vector<1x384xf32>
    %c0_1 = arith.constant 0 : index
    %9 = memref.load %arg1[%c0_1] : memref<1xf32, #tpu.memory_space<smem>>
    %10 = vector.broadcast %9 : f32 to vector<1x384xf32>
    %11 = arith.mulf %8, %10 : vector<1x384xf32>
    %12 = tpu.iota {dimensions = array<i32: 1>} : vector<1x384xi32>
    %c3_i32 = arith.constant 3 : i32
    %c0_i32 = arith.constant 0 : i32
    %13 = arith.cmpi eq, %c3_i32, %c0_i32 : i32
    %c1_i32 = arith.constant 1 : i32
    %14 = arith.select %13, %c1_i32, %c3_i32 : i32
    %15 = vector.broadcast %14 : i32 to vector<1x384xi32>
    %16 = arith.remsi %12, %15 : vector<1x384xi32>
    %c0_i32_2 = arith.constant 0 : i32
    %17 = vector.broadcast %c0_i32_2 : i32 to vector<1x384xi32>
    %18 = arith.cmpi ne, %16, %17 : vector<1x384xi32>
    %c0_i32_3 = arith.constant 0 : i32
    %19 = vector.broadcast %c0_i32_3 : i32 to vector<1x384xi32>
    %20 = arith.cmpi slt, %16, %19 : vector<1x384xi32>
    %c0_i32_4 = arith.constant 0 : i32
    %21 = arith.cmpi slt, %14, %c0_i32_4 : i32
    %22 = vector.broadcast %21 : i1 to vector<1x384xi1>
    %23 = vector.broadcast %22 : vector<1x384xi1> to vector<1x384xi1>
    %24 = arith.xori %20, %23 : vector<1x384xi1>
    %25 = arith.andi %24, %18 : vector<1x384xi1>
    %26 = vector.broadcast %14 : i32 to vector<1x384xi32>
    %27 = arith.addi %16, %26 : vector<1x384xi32>
    %28 = arith.select %25, %27, %16 : vector<1x384xi1>, vector<1x384xi32>
    %c1_i32_5 = arith.constant 1 : i32
    %29 = vector.broadcast %c1_i32_5 : i32 to vector<1x384xi32>
    %30 = arith.cmpi eq, %28, %29 : vector<1x384xi32>
    %c1_i32_6 = arith.constant 1 : i32
    %31 = tpu.dynamic_rotate %11 by %c1_i32_6 dim 1 : vector<1x384xf32>, i32 -> vector<1x384xf32>
    %32 = arith.select %30, %31, %11 : vector<1x384xi1>, vector<1x384xf32>
    %c2_i32 = arith.constant 2 : i32
    %33 = vector.broadcast %c2_i32 : i32 to vector<1x384xi32>
    %34 = arith.cmpi eq, %28, %33 : vector<1x384xi32>
    %c2_i32_7 = arith.constant 2 : i32
    %35 = tpu.dynamic_rotate %11 by %c2_i32_7 dim 1 : vector<1x384xf32>, i32 -> vector<1x384xf32>
    %36 = arith.select %34, %35, %32 : vector<1x384xi1>, vector<1x384xf32>
    %37 = arith.mulf %0, %36 : vector<1x384xf32>
    %c0_8 = arith.constant 0 : index
    %c0_9 = arith.constant 0 : index
    %38 = vector.load %arg3[%c0_8, %c0_9] : memref<1x384xf32, #tpu.memory_space<vmem>>, vector<1x384xf32>
    tpu.vector_store %arg3[%c0_8, %c0_9], %37 {strides = array<i32>} : memref<1x384xf32, #tpu.memory_space<vmem>>, vector<1x384xf32>,
    return
  }
  func.func @transform_0(%arg0: i32) -> i32 {
    %c0_i32 = arith.constant 0 : i32
    %c0_i32_0 = arith.constant 0 : i32
    return %c0_i32 : i32
  }
  func.func @transform_1(%arg0: i32) -> (i32, i32) {
    %c0_i32 = arith.constant 0 : i32
    %c0_i32_0 = arith.constant 0 : i32
    return %arg0, %c0_i32 : i32, i32
  }
  func.func @transform_2(%arg0: i32) -> (i32, i32) {
    %c0_i32 = arith.constant 0 : i32
    %c0_i32_0 = arith.constant 0 : i32
    return %arg0, %c0_i32 : i32, i32
  }
}

</mosaic_0001>

<llo_original>
// kernel: tpu_custom_call.1
$region0: #{tpu_custom_call.1}
  #allocation0 [shape = 'u32[]', space=smem, size = 0x4, offset = 0x4, fixed_abs, tag = 'smem constant byte address 0x4 - core index']
  #allocation1 [shape = 'u32[144,128]{1,0:T(1,128)}', space=vmem, size = 0x12000, scoped, tag = 'internal scratch']
  #allocation2 [shape = 'f32[1]{0:T(128)S(6)}', space=smem, size = 0x200, scoped, tag = 'scoped memory for tpu_custom_call.1']
  %s0 = inlined_call_operand.<no memory space> [shape: f32[1], index: 0, kind: input, shape index: {}]
  %s1 = inlined_call_operand.vmem [shape: f32[1,384], index: 1, kind: input, shape index: {}]
  %s2 = inlined_call_operand.hbm [shape: f32[1,384], index: 2, kind: output, shape index: {}]
  %s3 = sld [smem:[#allocation0]]
  $region18: #{tpu_custom_call.1} parent=0
    _
  %s5 = ssub.s32 1, %s3
  %s6 = scalar_select 0, %s5, %s3
  %7 = sst [smem:[#allocation2]] %s0
  $region1: #{tpu_custom_call.1} parent=0
    #allocation3 [shape = 'u8[1536]{0}', space=vmem, size = 0x800, scoped, tag = 'output window, operand 0, single buffered']
    #allocation4 [shape = 's32[1]{0}', space=sflag, size = 0x4, scoped, tag = 'scoped memory for tpu_custom_call.1']
    %8 = vsyncpa [#allocation4], 0
    // Predicated region
    $region2: #{tpu_custom_call.1} parent=1 // pred_check
      _
    $region3: #{tpu_custom_call.1} parent=1 // pred_check_branch
      %10 = sbr.rel (0) target = $region5
    $region4: #{tpu_custom_call.1} parent=1 // pred_region
      _
    $region5: #{tpu_custom_call.1} parent=1 // pred_fallthru
      _
    // Predicated region
    $region6: #{tpu_custom_call.1} parent=1 // pred_check
      _
    $region7: #{tpu_custom_call.1} parent=1 // pred_check_branch
      %12 = sbr.rel (0) target = $region9
    $region8: #{tpu_custom_call.1} parent=1 // pred_region
      _
    $region9: #{tpu_custom_call.1} parent=1 // pred_fallthru
      _
    %v13 = vld [vmem:[%s1] sm:$0x7]
    %v14 = vmul.f32 %v13, %v13
    %v16 = vlaneseq
    %v17 = vshrl.u32 %v16, 7
    %v18 = vsub.s32 0, %v17
    %v19 = vrot.slane %v14, %v18
    %v20 = vlaneseq
    %v21 = vshrl.u32 %v20, 7
    %v22 = vsub.s32 1, %v21
    %v23 = vrot.slane %v14, %v22
    %v24 = vlaneseq
    %v25 = vshrl.u32 %v24, 7
    %v26 = vsub.s32 2, %v25
    %v27 = vrot.slane %v14, %v26
    %31 = vrot.lane.b32.xlu0 %v19, 127
    %v32 = vpop.permute.xlu0 %31
    %33 = vrot.lane.b32.xlu0 %v23, 127
    %v34 = vpop.permute.xlu0 %33
    %35 = vrot.lane.b32.xlu0 %v27, 127
    %v36 = vpop.permute.xlu0 %35
    %v37 = vlaneseq
    %v38 = vand.u32 %v37, 127
    %vm39 = vcmp.lt.s32.totalorder %v38, 127
    %v40 = vsel %vm39, %v34, %v36
    %v41 = vsel %vm39, %v32, %v34
    %v42 = vsel %vm39, %v36, %v32
    %v46 = vcombine.low %v41, %v40
    %v48 = vunpack.c.l.s4 1966171168
    %v49 = vunpack.c.0.s8 %v48
    %v50 = vlaneseq
    %v51 = vshrl.u32 %v50, 7
    %v52 = vsub.s32 %v49, %v51
    %v53 = vrot.slane %v46, %v52
    %v55 = vunpack.c.l.s4 1966171168
    %v56 = vunpack.c.0.s8 %v55
    %v57 = vlaneseq
    %v58 = vshrl.u32 %v57, 7
    %v59 = vsub.s32 %v56, %v58
    %v60 = vrot.slane %v42, %v59
    %v61 = vcombine.low %v53, %v60
    %v63 = vunpack.c.l.s4 1966171168
    %v64 = vunpack.c.0.s8 %v63
    %v65 = vlaneseq
    %v66 = vshrl.u32 %v65, 7
    %v67 = vsub.s32 %v64, %v66
    %v68 = vrot.slane %v61, %v67
    %v70 = vadd.f32 %v14, %v68
    %71 = vrot.lane.b32.xlu0 %v19, 126
    %v72 = vpop.permute.xlu0 %71
    %73 = vrot.lane.b32.xlu0 %v23, 126
    %v74 = vpop.permute.xlu0 %73
    %75 = vrot.lane.b32.xlu0 %v27, 126
    %v76 = vpop.permute.xlu0 %75
    %vm77 = vcmp.lt.s32.totalorder %v38, 126
    %v78 = vsel %vm77, %v74, %v76
    %v79 = vsel %vm77, %v72, %v74
    %v80 = vsel %vm77, %v76, %v72
    %v84 = vcombine.low %v79, %v78
    %v86 = vunpack.c.l.s4 1966171168
    %v87 = vunpack.c.0.s8 %v86
    %v88 = vlaneseq
    %v89 = vshrl.u32 %v88, 7
    %v90 = vsub.s32 %v87, %v89
    %v91 = vrot.slane %v84, %v90
    %v93 = vunpack.c.l.s4 1966171168
    %v94 = vunpack.c.0.s8 %v93
    %v95 = vlaneseq
    %v96 = vshrl.u32 %v95, 7
    %v97 = vsub.s32 %v94, %v96
    %v98 = vrot.slane %v80, %v97
    %v99 = vcombine.low %v91, %v98
    %v101 = vunpack.c.l.s4 1966171168
    %v102 = vunpack.c.0.s8 %v101
    %v103 = vlaneseq
    %v104 = vshrl.u32 %v103, 7
    %v105 = vsub.s32 %v102, %v104
    %v106 = vrot.slane %v99, %v105
    %v108 = vadd.f32 %v70, %v106
    %v109 = vrsqrt.pop %v108
    %v110 = vmin.f32 %v109, 1000000.0
    %s111 = sld [smem:[#allocation2]]
    %v112 = vstv %s111
    %v113 = vmul.f32 %v110, %v112
    %v114 = vadd.s32 %v38, 128
    %v115 = vadd.s32 %v38, 256
    %vm116 = vcmp.lt.s32.totalorder %v38, 0
    %v117 = vsub.s32 0, %v38
    %v118 = vsel %vm116, %v117, %v38
    %v119 = vmul.u32.u64.compose %v118, 2863311531
    %v120 = vextract.low.u32 %v119
    %v121 = vextract.high.u32 %v119
    %v122 = vshrl.u32 %v121, 1
    %v123 = vmul.u32 %v122, 3
    %v124 = vsub.s32 %v118, %v123
    %v125 = vsub.s32 0, %v124
    %v126 = vsel %vm116, %v125, %v124
    %vm127 = vcmp.lt.s32.totalorder %v114, 0
    %v128 = vsub.s32 0, %v114
    %v129 = vsel %vm127, %v128, %v114
    %v130 = vmul.u32.u64.compose %v129, 2863311531
    %v131 = vextract.low.u32 %v130
    %v132 = vextract.high.u32 %v130
    %v133 = vshrl.u32 %v132, 1
    %v134 = vmul.u32 %v133, 3
    %v135 = vsub.s32 %v129, %v134
    %v136 = vsub.s32 0, %v135
    %v137 = vsel %vm127, %v136, %v135
    %vm138 = vcmp.lt.s32.totalorder %v115, 0
    %v139 = vsub.s32 0, %v115
    %v140 = vsel %vm138, %v139, %v115
    %v141 = vmul.u32.u64.compose %v140, 2863311531
    %v142 = vextract.low.u32 %v141
    %v143 = vextract.high.u32 %v141
    %v144 = vshrl.u32 %v143, 1
    %v145 = vmul.u32 %v144, 3
    %v146 = vsub.s32 %v140, %v145
    %v147 = vsub.s32 0, %v146
    %v148 = vsel %vm138, %v147, %v146
    %vm149 = vcmp.ne.s32.totalorder %v126, 0
    %vm150 = vcmp.ne.s32.totalorder %v137, 0
    %vm151 = vcmp.ne.s32.totalorder %v148, 0
    %vm152 = vcmp.lt.s32.totalorder %v126, 0
    %vm153 = vcmp.lt.s32.totalorder %v137, 0
    %vm154 = vcmp.lt.s32.totalorder %v148, 0
    %vm155 = vmand %vm152, %vm149
    %vm156 = vmand %vm153, %vm150
    %vm157 = vmand %vm154, %vm151
    %v158 = vadd.s32 %v126, 3
    %v159 = vadd.s32 %v137, 3
    %v160 = vadd.s32 %v148, 3
    %v161 = vsel %vm155, %v158, %v126
    %v162 = vsel %vm156, %v159, %v137
    %v163 = vsel %vm157, %v160, %v148
    %vm164 = vcmp.eq.s32.totalorder %v161, 1
    %vm165 = vcmp.eq.s32.totalorder %v162, 1
    %vm166 = vcmp.eq.s32.totalorder %v163, 1
    %v168 = vlaneseq
    %v169 = vshrl.u32 %v168, 7
    %v170 = vsub.s32 0, %v169
    %v171 = vrot.slane %v113, %v170
    %v172 = vlaneseq
    %v173 = vshrl.u32 %v172, 7
    %v174 = vsub.s32 1, %v173
    %v175 = vrot.slane %v113, %v174
    %v176 = vlaneseq
    %v177 = vshrl.u32 %v176, 7
    %v178 = vsub.s32 2, %v177
    %v179 = vrot.slane %v113, %v178
    %183 = vrot.lane.b32.xlu0 %v171, 1
    %v184 = vpop.permute.xlu0 %183
    %185 = vrot.lane.b32.xlu0 %v175, 1
    %v186 = vpop.permute.xlu0 %185
    %187 = vrot.lane.b32.xlu0 %v179, 1
    %v188 = vpop.permute.xlu0 %187
    %vm189 = vcmp.lt.s32.totalorder %v38, 1
    %v190 = vsel %vm189, %v186, %v188
    %v191 = vsel %vm189, %v184, %v186
    %v192 = vsel %vm189, %v188, %v184
    %v193 = vsel %vm164, %v192, %v171
    %v194 = vsel %vm165, %v191, %v175
    %v195 = vsel %vm166, %v190, %v179
    %vm196 = vcmp.eq.s32.totalorder %v161, 2
    %vm197 = vcmp.eq.s32.totalorder %v162, 2
    %vm198 = vcmp.eq.s32.totalorder %v163, 2
    %199 = vrot.lane.b32.xlu0 %v171, 2
    %v200 = vpop.permute.xlu0 %199
    %201 = vrot.lane.b32.xlu0 %v175, 2
    %v202 = vpop.permute.xlu0 %201
    %203 = vrot.lane.b32.xlu0 %v179, 2
    %v204 = vpop.permute.xlu0 %203
    %vm205 = vcmp.lt.s32.totalorder %v38, 2
    %v206 = vsel %vm205, %v202, %v204
    %v207 = vsel %vm205, %v200, %v202
    %v208 = vsel %vm205, %v204, %v200
    %v209 = vsel %vm196, %v208, %v193
    %v210 = vsel %vm197, %v207, %v194
    %v211 = vsel %vm198, %v206, %v195
    %v215 = vcombine.low %v209, %v210
    %v217 = vunpack.c.l.s4 1966171168
    %v218 = vunpack.c.0.s8 %v217
    %v219 = vlaneseq
    %v220 = vshrl.u32 %v219, 7
    %v221 = vsub.s32 %v218, %v220
    %v222 = vrot.slane %v215, %v221
    %v224 = vunpack.c.l.s4 1966171168
    %v225 = vunpack.c.0.s8 %v224
    %v226 = vlaneseq
    %v227 = vshrl.u32 %v226, 7
    %v228 = vsub.s32 %v225, %v227
    %v229 = vrot.slane %v211, %v228
    %v230 = vcombine.low %v222, %v229
    %v232 = vunpack.c.l.s4 1966171168
    %v233 = vunpack.c.0.s8 %v232
    %v234 = vlaneseq
    %v235 = vshrl.u32 %v234, 7
    %v236 = vsub.s32 %v233, %v235
    %v237 = vrot.slane %v230, %v236
    %v239 = vmul.f32 %v13, %v237
    %v240 = vlaneseq
    %vm241 = vcmp.ge.s32.totalorder %v240, 0
    %vm242 = vcmp.lt.s32.totalorder %v240, 384
    %vm243 = vmand %vm241, %vm242
    %244 = vst.msk [vmem:[#allocation3] sm:$0x7] %vm243, %v239
    // Predicated region
    $region10: #{tpu_custom_call.1} parent=1 // pred_check
      _
    $region11: #{tpu_custom_call.1} parent=1 // pred_check_branch
      %246 = sbr.rel (0) target = $region13
    $region12: #{tpu_custom_call.1} parent=1 // pred_region
      %s248 = ssub.s32 48, 48
      %249 = vsyncadd [#allocation4], %s248
      %s251 = sshll.u32 [#allocation3], 4
      %s252 = int_to_ptr.vmem [resolvable:$true] %s251
      %254 = dma.vmem_to_hbm [thread:$0]  %s252, 48, %s2, [#allocation4]
    $region13: #{tpu_custom_call.1} parent=1 // pred_fallthru
      _
    // Predicated region
    $region14: #{tpu_custom_call.1} parent=1 // pred_check
      _
    $region15: #{tpu_custom_call.1} parent=1 // pred_check_branch
      %256 = sbr.rel (0) target = $region17
    $region16: #{tpu_custom_call.1} parent=1 // pred_region
      %257 = dma.done [#allocation4], 48
    $region17: #{tpu_custom_call.1} parent=1 // pred_fallthru
      _
    %258 = vsyncpa [#allocation4], 1

</llo_original>
